<compile_context>
chip_gen: v7x
topology: tpu7x:2x2x1
jax: 0.10.0
libtpu: 0.0.40
codegen_flags: <defaults>
</compile_context>

<pallas_src>
import math

import numpy as np
import jax
import jax.numpy as jnp
from jax.experimental import pallas as pl
from jax.experimental.pallas import tpu as pltpu

KH = KW = 3          # conv kernel size
NEG_SLOPE = 0.01     # torch.nn.LeakyReLU default
BN_EPS = 1e-5        # torch.nn.BatchNorm2d default


def _make_kernel(nb, h, w, cin, cout):
    ho = h // 2
    wo = w // 2
    hp = h + 2                    # rows per image in the row-padded staging buffer
    rows = nb * hp                # staged rows per grid step
    m_out = nb * ho // 2          # packed output rows per grid step

    def kernel(x_ref, m_ref, p_ref, q_ref, scale_ref, shift_ref, out_ref, xpad_ref):
        """One grid step = nb images, fully batched matmuls, lane-packed layout.

        x_ref     : (nb*h, w*cin)            bf16  input rows, lane = w*cin + ci
        m_ref     : (3, w*cin, w*cout)       bf16  banded conv matrices (one per ky)
        p_ref     : (4, m_out, rows-2)       bf16  row-pool / row-pack selection
                    [0],[1] = even pooled row, taps 0/1; [2],[3] = odd pooled row
        q_ref     : (4, w*cout, 2*wo*cout)   bf16  col-pool + lane-half placement
                    [0],[1] = even/odd col -> lanes[:wo*cout]; [2],[3] -> lanes[wo*cout:]
        scale_ref : (1, 2*wo*cout)           f32   folded BN scale (tiled over 2*wo)
        shift_ref : (1, 2*wo*cout)           f32   folded BN shift (conv bias folded in)
        out_ref   : (m_out, 2*wo*cout)       f32
        xpad_ref  : VMEM (nb*(h+2), w*cin)   f32   row-padded staging buffer
        """
        # --- stage inputs; zero ONLY the 2*nb halo rows (data rows are overwritten) ---
        zrow = jnp.zeros((1, w * cin), jnp.float32)
        for n in range(nb):
            base = n * hp
            xpad_ref[base:base + 1, :] = zrow
            xpad_ref[base + h + 1:base + h + 2, :] = zrow
            xpad_ref[base + 1:base + 1 + h, :] = (
                x_ref[n * h:(n + 1) * h, :].astype(jnp.float32))

        # --- 3x3 conv (stride 1, pad 1) for all nb images: 3 banded MXU matmuls ---
        acc = jnp.dot(xpad_ref[0:rows - 2, :].astype(jnp.bfloat16), m_ref[0],
                      preferred_element_type=jnp.float32)
        acc = acc + jnp.dot(xpad_ref[1:rows - 1, :].astype(jnp.bfloat16), m_ref[1],
                            preferred_element_type=jnp.float32)
        acc = acc + jnp.dot(xpad_ref[2:rows, :].astype(jnp.bfloat16), m_ref[2],
                            preferred_element_type=jnp.float32)
        # acc[n*hp + h'] = conv output row h' of image n; seam rows are junk but
        # are never selected by P.
        accb = acc.astype(jnp.bfloat16)

        # --- MaxPool over rows + pack 2 pooled rows per output row (P selection) ---
        rlo = jnp.maximum(
            jnp.dot(p_ref[0], accb, preferred_element_type=jnp.float32),
            jnp.dot(p_ref[1], accb, preferred_element_type=jnp.float32)).astype(jnp.bfloat16)
        rhi = jnp.maximum(
            jnp.dot(p_ref[2], accb, preferred_element_type=jnp.float32),
            jnp.dot(p_ref[3], accb, preferred_element_type=jnp.float32)).astype(jnp.bfloat16)

        # --- MaxPool over columns + place halves into lanes [0:Wo*C) / [Wo*C:2*Wo*C) ---
        lo = jnp.maximum(jnp.dot(rlo, q_ref[0], preferred_element_type=jnp.float32),
                         jnp.dot(rlo, q_ref[1], preferred_element_type=jnp.float32))
        hi = jnp.maximum(jnp.dot(rhi, q_ref[2], preferred_element_type=jnp.float32),
                         jnp.dot(rhi, q_ref[3], preferred_element_type=jnp.float32))
        pooled = lo + hi                                     # (m_out, 2*wo*cout) f32

        # --- BatchNorm (eval, folded) + LeakyReLU (+ Dropout2d == identity) ---
        y = pooled * scale_ref[...] + shift_ref[...]
        y = jnp.where(y >= 0.0, y, NEG_SLOPE * y)
        out_ref[...] = y.astype(out_ref.dtype)

    return kernel


def _choose_nb(n_images, h, nb_max):
    """Images per grid step.  Keeps nb*h a multiple of 32 (8-aligned packed
    output blocks), targets ~128 staged rows/step for MXU M-dim utilization and
    prefers >=2 grid steps (v7x megacore) when there are enough images."""
    align = 32 // math.gcd(32, h)
    target = max(1, -(-128 // h))
    nb = max(align, (min(max(nb_max, align), target) // align) * align)
    if n_images <= align:
        return align                          # single (possibly padded) grid step
    if nb >= n_images:                        # expose >=2 grid steps
        half = -(-((n_images + 1) // 2) // align) * align
        nb = max(align, min(nb, half))
    return nb


def encoder_block_forward(x_nchw, conv_w, conv_b, gamma, beta, run_mean, run_var,
                          *, nb_max=8):
    """Pallas implementation of EncoderBlock.forward (eval mode). I/O is NCHW."""
    N, Cin, H, W = x_nchw.shape
    Cout = conv_w.shape[0]
    assert H % 4 == 0 and W % 2 == 0, "kernel assumes H % 4 == 0 and even W"
    Ho, Wo = H // 2, W // 2

    nb = _choose_nb(N, H, nb_max)
    n_steps = -(-N // nb)
    n_pad = nb * n_steps
    hp = H + 2
    rows = nb * hp
    m_out = nb * Ho // 2

    # --- layout glue: channels-last, lanes = (w, channel) packed, bf16 ----------
    x2d = (jnp.transpose(x_nchw, (0, 2, 3, 1))
           .reshape(N * H, W * Cin)
           .astype(jnp.bfloat16))
    if n_pad > N:
        x2d = jnp.pad(x2d, ((0, (n_pad - N) * H), (0, 0)))

    # --- banded conv matrices: conv_row[r] = sum_ky xpad_row[r+ky] @ M[ky] ------
    w_hwio = jnp.transpose(conv_w, (2, 3, 1, 0)).astype(jnp.float32)   # (KH,KW,Cin,Cout)
    sel = np.zeros((KW, W, W), np.float32)                             # sel[kx, w_in, w_out]
    for kx in range(KW):
        for w_out in range(W):
            w_in = w_out + kx - 1
            if 0 <= w_in < W:              # zero padding along W folded into the band
                sel[kx, w_in, w_out] = 1.0
    m_all = jnp.einsum("kpw,ykio->ypiwo", jnp.asarray(sel), w_hwio)
    m_all = m_all.reshape(KH, W * Cin, W * Cout).astype(jnp.bfloat16)

    # --- row-pool / row-pack selection P (acts on the whole batched conv slab) --
    p_all = np.zeros((2, 2, m_out, rows - 2), np.float32)
    for n in range(nb):
        for j in range(Ho // 2):
            for half in range(2):
                pr = 2 * j + half                           # pooled row within image
                for tap in range(2):
                    p_all[half, tap, n * (Ho // 2) + j, n * hp + 2 * pr + tap] = 1.0
    p_all = p_all.reshape(4, m_out, rows - 2)

    # --- col-pool selection + lane-half placement Q -----------------------------
    q_all = np.zeros((2, 2, W * Cout, 2 * Wo * Cout), np.float32)
    for half in range(2):
        for i in range(Wo):
            for c in range(Cout):
                q_all[half, 0, (2 * i) * Cout + c, half * Wo * Cout + i * Cout + c] = 1.0
                q_all[half, 1, (2 * i + 1) * Cout + c, half * Wo * Cout + i * Cout + c] = 1.0
    q_all = q_all.reshape(4, W * Cout, 2 * Wo * Cout)

    # --- folded BatchNorm affine (conv bias folded into the shift) --------------
    scale = (gamma / jnp.sqrt(run_var + BN_EPS)).astype(jnp.float32)
    shift = (beta + (conv_b - run_mean) * scale).astype(jnp.float32)
    scale_t = jnp.tile(scale, 2 * Wo).reshape(1, 2 * Wo * Cout)
    shift_t = jnp.tile(shift, 2 * Wo).reshape(1, 2 * Wo * Cout)

    out2d = pl.pallas_call(
        _make_kernel(nb, H, W, Cin, Cout),
        out_shape=jax.ShapeDtypeStruct((n_pad * Ho // 2, 2 * Wo * Cout), jnp.float32),
        grid_spec=pltpu.PrefetchScalarGridSpec(
            num_scalar_prefetch=0,
            grid=(n_steps,),
            in_specs=[
                pl.BlockSpec((nb * H, W * Cin), lambda g: (g, 0)),
                pl.BlockSpec((KH, W * Cin, W * Cout), lambda g: (0, 0, 0)),
                pl.BlockSpec((4, m_out, rows - 2), lambda g: (0, 0, 0)),
                pl.BlockSpec((4, W * Cout, 2 * Wo * Cout), lambda g: (0, 0, 0)),
                pl.BlockSpec((1, 2 * Wo * Cout), lambda g: (0, 0)),
                pl.BlockSpec((1, 2 * Wo * Cout), lambda g: (0, 0)),
            ],
            out_specs=pl.BlockSpec((m_out, 2 * Wo * Cout), lambda g: (g, 0)),
            scratch_shapes=[pltpu.VMEM((rows, W * Cin), jnp.float32)],
        ),
        # batch axis is fully independent -> shard across TensorCores on v7x
        compiler_params=pltpu.CompilerParams(
            dimension_semantics=("parallel",),
            vmem_limit_bytes=32 * 1024 * 1024),
    )(x2d, m_all,
      jnp.asarray(p_all, jnp.bfloat16),
      jnp.asarray(q_all, jnp.bfloat16),
      scale_t, shift_t)

    # --- unpack the lane-dense, row-pair-packed output back to NCHW -------------
    out = out2d.reshape(n_pad, Ho // 2, 2, Wo, Cout)[:N]
    out = jnp.transpose(out, (0, 4, 1, 2, 3)).reshape(N, Cout, Ho, Wo)
    return out


def _reference(x_nchw, conv_w, conv_b, gamma, beta, run_mean, run_var):
    """Pure-JAX (f32) reference of the eval-mode EncoderBlock forward (NCHW)."""
    conv = jax.lax.conv_general_dilated(
        x_nchw, conv_w, window_strides=(1, 1), padding=((1, 1), (1, 1)),
        dimension_numbers=("NCHW", "OIHW", "NCHW"))
    conv = conv + conv_b[None, :, None, None]
    pooled = jax.lax.reduce_window(
        conv, -jnp.inf, jax.lax.max,
        window_dimensions=(1, 1, 2, 2), window_strides=(1, 1, 2, 2), padding="VALID")
    bc = lambda v: v[None, :, None, None]
    y = (pooled - bc(run_mean)) / jnp.sqrt(bc(run_var) + BN_EPS) * bc(gamma) + bc(beta)
    return jnp.where(y >= 0.0, y, NEG_SLOPE * y)


if __name__ == "__main__":
    key = jax.random.PRNGKey(0)
    N, Cin, Cout, H, W = 2, 4, 8, 16, 16

    ks = jax.random.split(key, 7)
    x = jax.random.normal(ks[0], (N, Cin, H, W), jnp.float32)
    conv_w = 0.1 * jax.random.normal(ks[1], (Cout, Cin, KH, KW), jnp.float32)
    conv_b = 0.1 * jax.random.normal(ks[2], (Cout,), jnp.float32)
    gamma = 1.0 + 0.1 * jax.random.normal(ks[3], (Cout,), jnp.float32)
    beta = 0.1 * jax.random.normal(ks[4], (Cout,), jnp.float32)
    run_mean = 0.1 * jax.random.normal(ks[5], (Cout,), jnp.float32)
    run_var = jax.random.uniform(ks[6], (Cout,), jnp.float32, 0.5, 1.5)

    out = encoder_block_forward(x, conv_w, conv_b, gamma, beta, run_mean, run_var)
    out = jax.block_until_ready(out)
    ref = _reference(x, conv_w, conv_b, gamma, beta, run_mean, run_var)
    assert out.shape == (N, Cout, H // 2, W // 2), out.shape
    # bf16 MXU operands -> looser tolerance than the previous all-f32 kernel
    assert jnp.allclose(out, ref, atol=5e-2, rtol=5e-2), \
        float(jnp.max(jnp.abs(out - ref)))

    # Multi-step grid: nb=2 images per step, 2 "parallel" grid steps.
    x4 = jax.random.normal(jax.random.PRNGKey(1), (4, Cin, H, W), jnp.float32)
    out4 = jax.block_until_ready(
        encoder_block_forward(x4, conv_w, conv_b, gamma, beta, run_mean, run_var,
                              nb_max=2))
    ref4 = _reference(x4, conv_w, conv_b, gamma, beta, run_mean, run_var)
    assert jnp.allclose(out4, ref4, atol=5e-2, rtol=5e-2), \
        float(jnp.max(jnp.abs(out4 - ref4)))

    # Awkward batch size: padded up to a multiple of nb instead of degrading to nb=1.
    x3 = jax.random.normal(jax.random.PRNGKey(2), (3, Cin, H, W), jnp.float32)
    out3 = jax.block_until_ready(
        encoder_block_forward(x3, conv_w, conv_b, gamma, beta, run_mean, run_var))
    ref3 = _reference(x3, conv_w, conv_b, gamma, beta, run_mean, run_var)
    assert jnp.allclose(out3, ref3, atol=5e-2, rtol=5e-2), \
        float(jnp.max(jnp.abs(out3 - ref3)))

    print("KERNEL_OK")
</pallas_src>

<mosaic_0001>
module attributes {stable_mosaic.version = 11 : i64} {
  func.func @kernel(%arg0: i32, %arg1: memref<32x64xbf16, #tpu.memory_space<vmem>>, %arg2: memref<3x64x128xbf16, #tpu.memory_space<vmem>>, %arg3: memref<4x8x34xbf16, #tpu.memory_space<vmem>>, %arg4: memref<4x128x128xbf16, #tpu.memory_space<vmem>>, %arg5: memref<1x128xf32, #tpu.memory_space<vmem>>, %arg6: memref<1x128xf32, #tpu.memory_space<vmem>>, %arg7: memref<8x128xf32, #tpu.memory_space<vmem>>, %arg8: memref<36x64xf32, #tpu.memory_space<vmem>>) attributes {dimension_semantics = [#tpu.dimension_semantics<parallel>], iteration_bounds = array<i64: 1>, scalar_prefetch = 0 : i64, scratch_operands = 1 : i64, tpu.core_type = #tpu.core_type<tc>, window_params = [{transform_indices = @transform_0, window_bounds = array<i64: 32, 64>}, {pipeline_mode = #tpu.pipeline_mode<synchronous>, transform_indices = @transform_1, window_bounds = array<i64: 3, 64, 128>}, {pipeline_mode = #tpu.pipeline_mode<synchronous>, transform_indices = @transform_2, window_bounds = array<i64: 4, 8, 34>}, {pipeline_mode = #tpu.pipeline_mode<synchronous>, transform_indices = @transform_3, window_bounds = array<i64: 4, 128, 128>}, {pipeline_mode = #tpu.pipeline_mode<synchronous>, transform_indices = @transform_4, window_bounds = array<i64: 1, 128>}, {pipeline_mode = #tpu.pipeline_mode<synchronous>, transform_indices = @transform_5, window_bounds = array<i64: 1, 128>}, {transform_indices = @transform_6, window_bounds = array<i64: 8, 128>}]} {
    %cst = arith.constant 0.000000e+00 : f32
    %0 = vector.broadcast %cst : f32 to vector<1x64xf32>
    %c0 = arith.constant 0 : index
    %c0_0 = arith.constant 0 : index
    %1 = vector.load %arg8[%c0, %c0_0] : memref<36x64xf32, #tpu.memory_space<vmem>>, vector<1x64xf32>
    tpu.vector_store %arg8[%c0, %c0_0], %0 {strides = array<i32>} : memref<36x64xf32, #tpu.memory_space<vmem>>, vector<1x64xf32>,
    %c17 = arith.constant 17 : index
    %c0_1 = arith.constant 0 : index
    %2 = vector.load %arg8[%c17, %c0_1] : memref<36x64xf32, #tpu.memory_space<vmem>>, vector<1x64xf32>
    tpu.vector_store %arg8[%c17, %c0_1], %0 {strides = array<i32>} : memref<36x64xf32, #tpu.memory_space<vmem>>, vector<1x64xf32>,
    %c0_2 = arith.constant 0 : index
    %c0_3 = arith.constant 0 : index
    %3 = vector.load %arg1[%c0_2, %c0_3] : memref<32x64xbf16, #tpu.memory_space<vmem>>, vector<16x64xbf16>
    %4 = arith.extf %3 : vector<16x64xbf16> to vector<16x64xf32>
    %c1 = arith.constant 1 : index
    %c0_4 = arith.constant 0 : index
    %5 = vector.load %arg8[%c1, %c0_4] : memref<36x64xf32, #tpu.memory_space<vmem>>, vector<16x64xf32>
    tpu.vector_store %arg8[%c1, %c0_4], %4 {strides = array<i32>} : memref<36x64xf32, #tpu.memory_space<vmem>>, vector<16x64xf32>,
    %c18 = arith.constant 18 : index
    %c0_5 = arith.constant 0 : index
    %6 = vector.load %arg8[%c18, %c0_5] : memref<36x64xf32, #tpu.memory_space<vmem>>, vector<1x64xf32>
    tpu.vector_store %arg8[%c18, %c0_5], %0 {strides = array<i32>} : memref<36x64xf32, #tpu.memory_space<vmem>>, vector<1x64xf32>,
    %c35 = arith.constant 35 : index
    %c0_6 = arith.constant 0 : index
    %7 = vector.load %arg8[%c35, %c0_6] : memref<36x64xf32, #tpu.memory_space<vmem>>, vector<1x64xf32>
    tpu.vector_store %arg8[%c35, %c0_6], %0 {strides = array<i32>} : memref<36x64xf32, #tpu.memory_space<vmem>>, vector<1x64xf32>,
    %c16 = arith.constant 16 : index
    %c0_7 = arith.constant 0 : index
    %8 = vector.load %arg1[%c16, %c0_7] : memref<32x64xbf16, #tpu.memory_space<vmem>>, vector<16x64xbf16>
    %9 = arith.extf %8 : vector<16x64xbf16> to vector<16x64xf32>
    %c19 = arith.constant 19 : index
    %c0_8 = arith.constant 0 : index
    %10 = vector.load %arg8[%c19, %c0_8] : memref<36x64xf32, #tpu.memory_space<vmem>>, vector<16x64xf32>
    tpu.vector_store %arg8[%c19, %c0_8], %9 {strides = array<i32>} : memref<36x64xf32, #tpu.memory_space<vmem>>, vector<16x64xf32>,
    %c0_9 = arith.constant 0 : index
    %c0_10 = arith.constant 0 : index
    %11 = vector.load %arg8[%c0_9, %c0_10] : memref<36x64xf32, #tpu.memory_space<vmem>>, vector<34x64xf32>
    %12 = arith.truncf %11 : vector<34x64xf32> to vector<34x64xbf16>
    %c0_11 = arith.constant 0 : index
    %c0_12 = arith.constant 0 : index
    %c0_13 = arith.constant 0 : index
    %13 = vector.load %arg2[%c0_11, %c0_12, %c0_13] : memref<3x64x128xbf16, #tpu.memory_space<vmem>>, vector<1x64x128xbf16>
    %14 = vector.shape_cast %13 : vector<1x64x128xbf16> to vector<64x128xbf16>
    %cst_14 = arith.constant dense<0.000000e+00> : vector<34x128xf32>
    %15 = tpu.matmul %12, %14, %cst_14 {dimension_numbers = #tpu.dot_dimension_numbers<[1], [0], [0], [1], [0, 0, 1, 1], [], []>} : vector<34x64xbf16>, vector<64x128xbf16>, vector<34x128xf32> -> vector<34x128xf32>
    %c1_15 = arith.constant 1 : index
    %c0_16 = arith.constant 0 : index
    %16 = vector.load %arg8[%c1_15, %c0_16] : memref<36x64xf32, #tpu.memory_space<vmem>>, vector<34x64xf32>
    %17 = arith.truncf %16 : vector<34x64xf32> to vector<34x64xbf16>
    %c1_17 = arith.constant 1 : index
    %c0_18 = arith.constant 0 : index
    %c0_19 = arith.constant 0 : index
    %18 = vector.load %arg2[%c1_17, %c0_18, %c0_19] : memref<3x64x128xbf16, #tpu.memory_space<vmem>>, vector<1x64x128xbf16>
    %19 = vector.shape_cast %18 : vector<1x64x128xbf16> to vector<64x128xbf16>
    %cst_20 = arith.constant dense<0.000000e+00> : vector<34x128xf32>
    %20 = tpu.matmul %17, %19, %cst_20 {dimension_numbers = #tpu.dot_dimension_numbers<[1], [0], [0], [1], [0, 0, 1, 1], [], []>} : vector<34x64xbf16>, vector<64x128xbf16>, vector<34x128xf32> -> vector<34x128xf32>
    %21 = arith.addf %15, %20 : vector<34x128xf32>
    %c2 = arith.constant 2 : index
    %c0_21 = arith.constant 0 : index
    %22 = vector.load %arg8[%c2, %c0_21] : memref<36x64xf32, #tpu.memory_space<vmem>>, vector<34x64xf32>
    %23 = arith.truncf %22 : vector<34x64xf32> to vector<34x64xbf16>
    %c2_22 = arith.constant 2 : index
    %c0_23 = arith.constant 0 : index
    %c0_24 = arith.constant 0 : index
    %24 = vector.load %arg2[%c2_22, %c0_23, %c0_24] : memref<3x64x128xbf16, #tpu.memory_space<vmem>>, vector<1x64x128xbf16>
    %25 = vector.shape_cast %24 : vector<1x64x128xbf16> to vector<64x128xbf16>
    %cst_25 = arith.constant dense<0.000000e+00> : vector<34x128xf32>
    %26 = tpu.matmul %23, %25, %cst_25 {dimension_numbers = #tpu.dot_dimension_numbers<[1], [0], [0], [1], [0, 0, 1, 1], [], []>} : vector<34x64xbf16>, vector<64x128xbf16>, vector<34x128xf32> -> vector<34x128xf32>
    %27 = arith.addf %21, %26 : vector<34x128xf32>
    %28 = arith.truncf %27 : vector<34x128xf32> to vector<34x128xbf16>
    %c0_26 = arith.constant 0 : index
    %c0_27 = arith.constant 0 : index
    %c0_28 = arith.constant 0 : index
    %29 = vector.load %arg3[%c0_26, %c0_27, %c0_28] : memref<4x8x34xbf16, #tpu.memory_space<vmem>>, vector<1x8x34xbf16>
    %30 = vector.shape_cast %29 : vector<1x8x34xbf16> to vector<8x34xbf16>
    %cst_29 = arith.constant dense<0.000000e+00> : vector<8x128xf32>
    %31 = tpu.matmul %30, %28, %cst_29 {dimension_numbers = #tpu.dot_dimension_numbers<[1], [0], [0], [1], [0, 0, 1, 1], [], []>} : vector<8x34xbf16>, vector<34x128xbf16>, vector<8x128xf32> -> vector<8x128xf32>
    %c1_30 = arith.constant 1 : index
    %c0_31 = arith.constant 0 : index
    %c0_32 = arith.constant 0 : index
    %32 = vector.load %arg3[%c1_30, %c0_31, %c0_32] : memref<4x8x34xbf16, #tpu.memory_space<vmem>>, vector<1x8x34xbf16>
    %33 = vector.shape_cast %32 : vector<1x8x34xbf16> to vector<8x34xbf16>
    %cst_33 = arith.constant dense<0.000000e+00> : vector<8x128xf32>
    %34 = tpu.matmul %33, %28, %cst_33 {dimension_numbers = #tpu.dot_dimension_numbers<[1], [0], [0], [1], [0, 0, 1, 1], [], []>} : vector<8x34xbf16>, vector<34x128xbf16>, vector<8x128xf32> -> vector<8x128xf32>
    %35 = arith.maximumf %31, %34 : vector<8x128xf32>
    %36 = arith.truncf %35 : vector<8x128xf32> to vector<8x128xbf16>
    %c2_34 = arith.constant 2 : index
    %c0_35 = arith.constant 0 : index
    %c0_36 = arith.constant 0 : index
    %37 = vector.load %arg3[%c2_34, %c0_35, %c0_36] : memref<4x8x34xbf16, #tpu.memory_space<vmem>>, vector<1x8x34xbf16>
    %38 = vector.shape_cast %37 : vector<1x8x34xbf16> to vector<8x34xbf16>
    %cst_37 = arith.constant dense<0.000000e+00> : vector<8x128xf32>
    %39 = tpu.matmul %38, %28, %cst_37 {dimension_numbers = #tpu.dot_dimension_numbers<[1], [0], [0], [1], [0, 0, 1, 1], [], []>} : vector<8x34xbf16>, vector<34x128xbf16>, vector<8x128xf32> -> vector<8x128xf32>
    %c3 = arith.constant 3 : index
    %c0_38 = arith.constant 0 : index
    %c0_39 = arith.constant 0 : index
    %40 = vector.load %arg3[%c3, %c0_38, %c0_39] : memref<4x8x34xbf16, #tpu.memory_space<vmem>>, vector<1x8x34xbf16>
    %41 = vector.shape_cast %40 : vector<1x8x34xbf16> to vector<8x34xbf16>
    %cst_40 = arith.constant dense<0.000000e+00> : vector<8x128xf32>
    %42 = tpu.matmul %41, %28, %cst_40 {dimension_numbers = #tpu.dot_dimension_numbers<[1], [0], [0], [1], [0, 0, 1, 1], [], []>} : vector<8x34xbf16>, vector<34x128xbf16>, vector<8x128xf32> -> vector<8x128xf32>
    %43 = arith.maximumf %39, %42 : vector<8x128xf32>
    %44 = arith.truncf %43 : vector<8x128xf32> to vector<8x128xbf16>
    %c0_41 = arith.constant 0 : index
    %c0_42 = arith.constant 0 : index
    %c0_43 = arith.constant 0 : index
    %45 = vector.load %arg4[%c0_41, %c0_42, %c0_43] : memref<4x128x128xbf16, #tpu.memory_space<vmem>>, vector<1x128x128xbf16>
    %46 = vector.shape_cast %45 : vector<1x128x128xbf16> to vector<128x128xbf16>
    %cst_44 = arith.constant dense<0.000000e+00> : vector<8x128xf32>
    %47 = tpu.matmul %36, %46, %cst_44 {dimension_numbers = #tpu.dot_dimension_numbers<[1], [0], [0], [1], [0, 0, 1, 1], [], []>} : vector<8x128xbf16>, vector<128x128xbf16>, vector<8x128xf32> -> vector<8x128xf32>
    %c1_45 = arith.constant 1 : index
    %c0_46 = arith.constant 0 : index
    %c0_47 = arith.constant 0 : index
    %48 = vector.load %arg4[%c1_45, %c0_46, %c0_47] : memref<4x128x128xbf16, #tpu.memory_space<vmem>>, vector<1x128x128xbf16>
    %49 = vector.shape_cast %48 : vector<1x128x128xbf16> to vector<128x128xbf16>
    %cst_48 = arith.constant dense<0.000000e+00> : vector<8x128xf32>
    %50 = tpu.matmul %36, %49, %cst_48 {dimension_numbers = #tpu.dot_dimension_numbers<[1], [0], [0], [1], [0, 0, 1, 1], [], []>} : vector<8x128xbf16>, vector<128x128xbf16>, vector<8x128xf32> -> vector<8x128xf32>
    %51 = arith.maximumf %47, %50 : vector<8x128xf32>
    %c2_49 = arith.constant 2 : index
    %c0_50 = arith.constant 0 : index
    %c0_51 = arith.constant 0 : index
    %52 = vector.load %arg4[%c2_49, %c0_50, %c0_51] : memref<4x128x128xbf16, #tpu.memory_space<vmem>>, vector<1x128x128xbf16>
    %53 = vector.shape_cast %52 : vector<1x128x128xbf16> to vector<128x128xbf16>
    %cst_52 = arith.constant dense<0.000000e+00> : vector<8x128xf32>
    %54 = tpu.matmul %44, %53, %cst_52 {dimension_numbers = #tpu.dot_dimension_numbers<[1], [0], [0], [1], [0, 0, 1, 1], [], []>} : vector<8x128xbf16>, vector<128x128xbf16>, vector<8x128xf32> -> vector<8x128xf32>
    %c3_53 = arith.constant 3 : index
    %c0_54 = arith.constant 0 : index
    %c0_55 = arith.constant 0 : index
    %55 = vector.load %arg4[%c3_53, %c0_54, %c0_55] : memref<4x128x128xbf16, #tpu.memory_space<vmem>>, vector<1x128x128xbf16>
    %56 = vector.shape_cast %55 : vector<1x128x128xbf16> to vector<128x128xbf16>
    %cst_56 = arith.constant dense<0.000000e+00> : vector<8x128xf32>
    %57 = tpu.matmul %44, %56, %cst_56 {dimension_numbers = #tpu.dot_dimension_numbers<[1], [0], [0], [1], [0, 0, 1, 1], [], []>} : vector<8x128xbf16>, vector<128x128xbf16>, vector<8x128xf32> -> vector<8x128xf32>
    %58 = arith.maximumf %54, %57 : vector<8x128xf32>
    %59 = arith.addf %51, %58 : vector<8x128xf32>
    %c0_57 = arith.constant 0 : index
    %c0_58 = arith.constant 0 : index
    %60 = vector.load %arg5[%c0_57, %c0_58] : memref<1x128xf32, #tpu.memory_space<vmem>>, vector<1x128xf32>
    %61 = vector.broadcast %60 : vector<1x128xf32> to vector<8x128xf32>
    %62 = arith.mulf %59, %61 : vector<8x128xf32>
    %c0_59 = arith.constant 0 : index
    %c0_60 = arith.constant 0 : index
    %63 = vector.load %arg6[%c0_59, %c0_60] : memref<1x128xf32, #tpu.memory_space<vmem>>, vector<1x128xf32>
    %64 = vector.broadcast %63 : vector<1x128xf32> to vector<8x128xf32>
    %65 = arith.addf %62, %64 : vector<8x128xf32>
    %cst_61 = arith.constant 0.000000e+00 : f32
    %66 = vector.broadcast %cst_61 : f32 to vector<8x128xf32>
    %67 = arith.cmpf oge, %65, %66 : vector<8x128xf32>
    %cst_62 = arith.constant 0.00999999977 : f32
    %68 = vector.broadcast %cst_62 : f32 to vector<8x128xf32>
    %69 = arith.mulf %68, %65 : vector<8x128xf32>
    %70 = arith.select %67, %65, %69 : vector<8x128xi1>, vector<8x128xf32>
    %c0_63 = arith.constant 0 : index
    %c0_64 = arith.constant 0 : index
    %71 = vector.load %arg7[%c0_63, %c0_64] : memref<8x128xf32, #tpu.memory_space<vmem>>, vector<8x128xf32>
    tpu.vector_store %arg7[%c0_63, %c0_64], %70 {strides = array<i32>} : memref<8x128xf32, #tpu.memory_space<vmem>>, vector<8x128xf32>,
    return
  }
  func.func @transform_0(%arg0: i32) -> (i32, i32) {
    %c0_i32 = arith.constant 0 : i32
    %c0_i32_0 = arith.constant 0 : i32
    return %arg0, %c0_i32 : i32, i32
  }
  func.func @transform_1(%arg0: i32) -> (i32, i32, i32) {
    %c0_i32 = arith.constant 0 : i32
    %c0_i32_0 = arith.constant 0 : i32
    %c0_i32_1 = arith.constant 0 : i32
    %c0_i32_2 = arith.constant 0 : i32
    return %c0_i32, %c0_i32_0, %c0_i32_1 : i32, i32, i32
  }
  func.func @transform_2(%arg0: i32) -> (i32, i32, i32) {
    %c0_i32 = arith.constant 0 : i32
    %c0_i32_0 = arith.constant 0 : i32
    %c0_i32_1 = arith.constant 0 : i32
    %c0_i32_2 = arith.constant 0 : i32
    return %c0_i32, %c0_i32_0, %c0_i32_1 : i32, i32, i32
  }
  func.func @transform_3(%arg0: i32) -> (i32, i32, i32) {
    %c0_i32 = arith.constant 0 : i32
    %c0_i32_0 = arith.constant 0 : i32
    %c0_i32_1 = arith.constant 0 : i32
    %c0_i32_2 = arith.constant 0 : i32
    return %c0_i32, %c0_i32_0, %c0_i32_1 : i32, i32, i32
  }
  func.func @transform_4(%arg0: i32) -> (i32, i32) {
    %c0_i32 = arith.constant 0 : i32
    %c0_i32_0 = arith.constant 0 : i32
    %c0_i32_1 = arith.constant 0 : i32
    return %c0_i32, %c0_i32_0 : i32, i32
  }
  func.func @transform_5(%arg0: i32) -> (i32, i32) {
    %c0_i32 = arith.constant 0 : i32
    %c0_i32_0 = arith.constant 0 : i32
    %c0_i32_1 = arith.constant 0 : i32
    return %c0_i32, %c0_i32_0 : i32, i32
  }
  func.func @transform_6(%arg0: i32) -> (i32, i32) {
    %c0_i32 = arith.constant 0 : i32
    %c0_i32_0 = arith.constant 0 : i32
    return %arg0, %c0_i32 : i32, i32
  }
}

</mosaic_0001>

<llo_original>
// kernel: tpu_custom_call.1
$region0: #{tpu_custom_call.1}
  #allocation0 [shape = 'u32[]', space=smem, size = 0x4, offset = 0x4, fixed_abs, tag = 'smem constant byte address 0x4 - core index']
  #allocation1 [shape = 'u32[144,128]{1,0:T(1,128)}', space=vmem, size = 0x12000, scoped, tag = 'internal scratch']
  #allocation2 [shape = 'f32[36,64]{1,0:T(8,128)}', space=vmem, size = 0x5000, scoped, tag = 'scratch operand']
  %s0 = inlined_call_operand.hbm [shape: bf16[32,64], index: 0, kind: input, shape index: {}]
  %s1 = inlined_call_operand.hbm [shape: bf16[3,64,128], index: 1, kind: input, shape index: {}]
  %s2 = inlined_call_operand.hbm [shape: bf16[4,8,34], index: 2, kind: input, shape index: {}]
  %s3 = inlined_call_operand.hbm [shape: bf16[4,128,128], index: 3, kind: input, shape index: {}]
  %s4 = inlined_call_operand.vmem [shape: f32[1,128], index: 4, kind: input, shape index: {}]
  %s5 = inlined_call_operand.vmem [shape: f32[1,128], index: 5, kind: input, shape index: {}]
  %s6 = inlined_call_operand.hbm [shape: f32[8,128], index: 6, kind: output, shape index: {}]
  %s7 = sld [smem:[#allocation0]]
  $region50: #{tpu_custom_call.1} parent=0
    _
  %s9 = ssub.s32 1, %s7
  %s10 = scalar_select 0, %s9, %s7
  $region1: #{tpu_custom_call.1} parent=0
    #allocation3 [shape = 'u8[8192]{0}', space=vmem, size = 0x2000, scoped, tag = 'input window, operand 0, single buffered']
    #allocation4 [shape = 's32[1]{0}', space=sflag, size = 0x4, scoped, tag = 'scoped memory for tpu_custom_call.1']
    #allocation5 [shape = 's32[1]{0}', space=sflag, size = 0x4, scoped, tag = 'scoped memory for tpu_custom_call.1']
    #allocation6 [shape = 'u8[49152]{0}', space=vmem, size = 0xc000, scoped, tag = 'input window, operand 1, single buffered']
    #allocation7 [shape = 's32[1]{0}', space=sflag, size = 0x4, scoped, tag = 'scoped memory for tpu_custom_call.1']
    #allocation8 [shape = 'u8[8192]{0}', space=vmem, size = 0x2000, scoped, tag = 'input window, operand 2, single buffered']
    #allocation9 [shape = 'u8[131072]{0}', space=vmem, size = 0x20000, scoped, tag = 'input window, operand 3, single buffered']
    #allocation10 [shape = 's32[1]{0}', space=sflag, size = 0x4, scoped, tag = 'scoped memory for tpu_custom_call.1']
    #allocation11 [shape = 'u8[4096]{0}', space=vmem, size = 0x1000, scoped, tag = 'output window, operand 0, single buffered']
    %11 = vsyncpa [#allocation4], 0
    %12 = vsyncpa [#allocation7], 0
    %13 = vsyncpa [#allocation10], 0
    %14 = vsyncpa [#allocation5], 0
    // Predicated region
    $region2: #{tpu_custom_call.1} parent=1 // pred_check
      _
    $region3: #{tpu_custom_call.1} parent=1 // pred_check_branch
      %16 = sbr.rel (0) target = $region5
    $region4: #{tpu_custom_call.1} parent=1 // pred_region
      %s18 = ssub.s32 256, 256
      %19 = vsyncadd [#allocation4], %s18
      %s20 = sshll.u32 [#allocation3], 4
      %s21 = int_to_ptr.vmem [resolvable:$true] %s20
      %26 = dma.hbm_to_vmem [thread:$0]  %s0, 256, %s21, [#allocation4], 64, 64, 4
    $region5: #{tpu_custom_call.1} parent=1 // pred_fallthru
      _
    // Predicated region
    $region6: #{tpu_custom_call.1} parent=1 // pred_check
      _
    $region7: #{tpu_custom_call.1} parent=1 // pred_check_branch
      %28 = sbr.rel (0) target = $region9
    $region8: #{tpu_custom_call.1} parent=1 // pred_region
      %s30 = ssub.s32 1536, 1536
      %31 = vsyncadd [#allocation7], %s30
      %s32 = sshll.u32 [#allocation6], 4
      %s33 = int_to_ptr.vmem [resolvable:$true] %s32
      %38 = dma.hbm_to_vmem [thread:$0]  %s1, 1536, %s33, [#allocation7], 64, 64, 4
    $region9: #{tpu_custom_call.1} parent=1 // pred_fallthru
      _
    // Predicated region
    $region10: #{tpu_custom_call.1} parent=1 // pred_check
      _
    $region11: #{tpu_custom_call.1} parent=1 // pred_check_branch
      %40 = sbr.rel (0) target = $region13
    $region12: #{tpu_custom_call.1} parent=1 // pred_region
      %s42 = ssub.s32 256, 256
      %43 = vsyncadd [#allocation7], %s42
      %s44 = sshll.u32 [#allocation8], 4
      %s45 = int_to_ptr.vmem [resolvable:$true] %s44
      %50 = dma.hbm_to_vmem [thread:$0]  %s2, 256, %s45, [#allocation7], 64, 64, 4
    $region13: #{tpu_custom_call.1} parent=1 // pred_fallthru
      _
    // Predicated region
    $region14: #{tpu_custom_call.1} parent=1 // pred_check
      _
    $region15: #{tpu_custom_call.1} parent=1 // pred_check_branch
      %52 = sbr.rel (0) target = $region17
    $region16: #{tpu_custom_call.1} parent=1 // pred_region
      %s54 = ssub.s32 4096, 4096
      %55 = vsyncadd [#allocation10], %s54
      %s56 = sshll.u32 [#allocation9], 4
      %s57 = int_to_ptr.vmem [resolvable:$true] %s56
      %62 = dma.hbm_to_vmem [thread:$0]  %s3, 4096, %s57, [#allocation10], 64, 64, 4
    $region17: #{tpu_custom_call.1} parent=1 // pred_fallthru
      _
    // Predicated region
    $region18: #{tpu_custom_call.1} parent=1 // pred_check
      _
    $region19: #{tpu_custom_call.1} parent=1 // pred_check_branch
      %64 = sbr.rel (0) target = $region21
    $region20: #{tpu_custom_call.1} parent=1 // pred_region
      _
    $region21: #{tpu_custom_call.1} parent=1 // pred_fallthru
      _
    // Predicated region
    $region22: #{tpu_custom_call.1} parent=1 // pred_check
      _
    $region23: #{tpu_custom_call.1} parent=1 // pred_check_branch
      %66 = sbr.rel (0) target = $region25
    $region24: #{tpu_custom_call.1} parent=1 // pred_region
      _
    $region25: #{tpu_custom_call.1} parent=1 // pred_fallthru
      _
    // Predicated region
    $region26: #{tpu_custom_call.1} parent=1 // pred_check
      _
    $region27: #{tpu_custom_call.1} parent=1 // pred_check_branch
      %68 = sbr.rel (0) target = $region29
    $region28: #{tpu_custom_call.1} parent=1 // pred_region
      %69 = dma.done [#allocation4], 256
    $region29: #{tpu_custom_call.1} parent=1 // pred_fallthru
      _
    // Predicated region
    $region30: #{tpu_custom_call.1} parent=1 // pred_check
      _
    $region31: #{tpu_custom_call.1} parent=1 // pred_check_branch
      %71 = sbr.rel (0) target = $region33
    $region32: #{tpu_custom_call.1} parent=1 // pred_region
      %72 = dma.done [#allocation7], 1536
    $region33: #{tpu_custom_call.1} parent=1 // pred_fallthru
      _
    // Predicated region
    $region34: #{tpu_custom_call.1} parent=1 // pred_check
      _
    $region35: #{tpu_custom_call.1} parent=1 // pred_check_branch
      %74 = sbr.rel (0) target = $region37
    $region36: #{tpu_custom_call.1} parent=1 // pred_region
      %75 = dma.done [#allocation7], 256
    $region37: #{tpu_custom_call.1} parent=1 // pred_fallthru
      _
    // Predicated region
    $region38: #{tpu_custom_call.1} parent=1 // pred_check
      _
    $region39: #{tpu_custom_call.1} parent=1 // pred_check_branch
      %77 = sbr.rel (0) target = $region41
    $region40: #{tpu_custom_call.1} parent=1 // pred_region
      %78 = dma.done [#allocation10], 4096
    $region41: #{tpu_custom_call.1} parent=1 // pred_fallthru
      _
    %vm80 = vcmask 516096
    %81 = vst.msk [vmem:[#allocation2] sm:$0x1] %vm80, 0.0
    %82 = vst.msk [vmem:[#allocation2 + $0x11] sm:$0x1] %vm80, 0.0
    %v83 = vld [vmem:[#allocation3] sm:$0xf]
    %v84 = vld [vmem:[#allocation3 + $0x4] sm:$0xf]
    %v85 = vunpack.c.l.bf16 %v83
    %v86 = vunpack.c.l.bf16 %v84
    %vm87 = vcmask 523264
    %88 = vst.msk [vmem:[#allocation2 + $0x1] sm:$0xff] %vm87, %v85
    %89 = vst.msk [vmem:[#allocation2 + $0x9] sm:$0xff] %vm87, %v86
    %90 = vst.msk [vmem:[#allocation2 + $0x12] sm:$0x1] %vm80, 0.0
    %91 = vst.msk [vmem:[#allocation2 + $0x23] sm:$0x1] %vm80, 0.0
    %v92 = vld [vmem:[#allocation3 + $0x8] sm:$0xf]
    %v93 = vld [vmem:[#allocation3 + $0xc] sm:$0xf]
    %v94 = vunpack.c.l.bf16 %v92
    %v95 = vunpack.c.l.bf16 %v93
    %96 = vst.msk [vmem:[#allocation2 + $0x13] sm:$0xff] %vm87, %v94
    %97 = vst.msk [vmem:[#allocation2 + $0x1b] sm:$0xff] %vm87, %v95
    %v98 = vld [vmem:[#allocation2] sm:$0xff]
    %v99 = vld [vmem:[#allocation2 + $0x8] sm:$0xff]
    %v100 = vld [vmem:[#allocation2 + $0x10] sm:$0xff]
    %v101 = vld [vmem:[#allocation2 + $0x18] sm:$0xff]
    %v102 = vld [vmem:[#allocation2 + $0x20] sm:$0x3]
    %v103 = vpack.c.bf16 %v99, %v98
    %v104 = vpack.c.bf16 %v101, %v100
    %v105 = vpack.c.bf16 %v102, %v102
    %v106 = vld [vmem:[#allocation6] sm:$0xf]
    %v107 = vld [vmem:[#allocation6 + $0x4] sm:$0xf]
    %v108 = vld [vmem:[#allocation6 + $0x8] sm:$0xf]
    %v109 = vld [vmem:[#allocation6 + $0xc] sm:$0xf]
    %v110 = vld [vmem:[#allocation6 + $0x10] sm:$0xf]
    %v111 = vld [vmem:[#allocation6 + $0x14] sm:$0xf]
    %v112 = vld [vmem:[#allocation6 + $0x18] sm:$0xf]
    %v113 = vld [vmem:[#allocation6 + $0x1c] sm:$0xf]
    %v114 = vld [vmem:[#allocation2 + $0x1] sm:$0xff]
    %v115 = vld [vmem:[#allocation2 + $0x9] sm:$0xff]
    %v116 = vld [vmem:[#allocation2 + $0x11] sm:$0xff]
    %v117 = vld [vmem:[#allocation2 + $0x19] sm:$0xff]
    %v118 = vld [vmem:[#allocation2 + $0x21] sm:$0x3]
    %v119 = vpack.c.bf16 %v115, %v114
    %v120 = vpack.c.bf16 %v117, %v116
    %v121 = vpack.c.bf16 %v118, %v118
    %s122 = scalar_lea.vmem [#allocation6], 32
    %v123 = vld [vmem:[%s122] sm:$0xf]
    %v124 = vld [vmem:[%s122 + $0x4] sm:$0xf]
    %v125 = vld [vmem:[%s122 + $0x8] sm:$0xf]
    %v126 = vld [vmem:[%s122 + $0xc] sm:$0xf]
    %v127 = vld [vmem:[%s122 + $0x10] sm:$0xf]
    %v128 = vld [vmem:[%s122 + $0x14] sm:$0xf]
    %v129 = vld [vmem:[%s122 + $0x18] sm:$0xf]
    %v130 = vld [vmem:[%s122 + $0x1c] sm:$0xf]
    %v139 = vunpack.c.l.b16 %v123
    %v140 = vunpack.c.l.b16 %v124
    %v141 = vunpack.c.l.b16 %v125
    %v142 = vunpack.c.l.b16 %v126
    %v143 = vunpack.c.l.b16 %v127
    %v144 = vunpack.c.l.b16 %v128
    %v145 = vunpack.c.l.b16 %v129
    %v146 = vunpack.c.l.b16 %v130
    %v147 = vpack.c.b16 %v140, %v139
    %v148 = vpack.c.b16 %v142, %v141
    %v149 = vpack.c.b16 %v144, %v143
    %v150 = vpack.c.b16 %v146, %v145
    %v156 = vsel %vm87, %v119, 0
    %v159 = vsel %vm87, %v120, 0
    %v162 = vsel %vm87, %v121, 0
    %164 = vmatprep.subr.bf16.mxu0 0
    %165 = vmatpush1.bf16.msra.mxu0 %v147
    %166 = vmatprep.subr.bf16.mxu0 0
    %167 = vmatpush1.bf16.msra.mxu0 %v148
    %168 = vmatprep.subr.bf16.mxu0 0
    %169 = vmatpush1.bf16.msra.mxu0 %v149
    %170 = vmatprep.subr.bf16.mxu0 0
    %171 = vmatpush1.bf16.msra.mxu0 %v150
    %172 = vmatprep.subr.bf16.mxu0 0
    %173 = vmatpush1.bf16.msra.mxu0 0
    %174 = vmatprep.subr.bf16.mxu0 0
    %175 = vmatpush1.bf16.msra.mxu0 0
    %176 = vmatprep.subr.bf16.mxu0 0
    %177 = vmatpush1.bf16.msra.mxu0 0
    %178 = vmatprep.subr.bf16.mxu0 0
    %179 = vmatpush1.bf16.msra.mxu0 0
    %180 = vmatprep.subr.bf16.mxu0 0
    %181 = vmatpush1.bf16.msra.mxu0 0
    %182 = vmatprep.subr.bf16.mxu0 0
    %183 = vmatpush1.bf16.msra.mxu0 0
    %184 = vmatprep.subr.bf16.mxu0 0
    %185 = vmatpush1.bf16.msra.mxu0 0
    %186 = vmatprep.subr.bf16.mxu0 0
    %187 = vmatpush1.bf16.msra.mxu0 0
    %188 = vmatprep.subr.bf16.mxu0 0
    %189 = vmatpush1.bf16.msra.mxu0 0
    %190 = vmatprep.subr.bf16.mxu0 0
    %191 = vmatpush1.bf16.msra.mxu0 0
    %192 = vmatprep.subr.bf16.mxu0 0
    %193 = vmatpush1.bf16.msra.mxu0 0
    %194 = vmatprep.subr.bf16.mxu0 0
    %195 = vmatpush1.bf16.msra.mxu0 0
    %196 = vmatprep.mubr.bf16.mxu0 0
    %197 = vmatmul.mubr.bf16.gmra.mrb[0].mxu0 %v156
    %v198 = vpop.f32.mrb[0].mxu0
    %v199 = vadd.f32 0.0, %v198
    %v200 = vpop.f32.mrb[0].mxu0
    %v201 = vpop.f32.mrb[0].mxu0
    %v202 = vadd.f32 0.0, %v201
    %v203 = vpop.f32.mrb[0].mxu0
    %204 = vmatprep.mubr.bf16.mxu0 0
    %205 = vmatmul.mubr.bf16.gmra.mrb[0].mxu0 %v159
    %v206 = vpop.f32.mrb[0].mxu0
    %v207 = vadd.f32 0.0, %v206
    %v208 = vpop.f32.mrb[0].mxu0
    %v209 = vpop.f32.mrb[0].mxu0
    %v210 = vadd.f32 0.0, %v209
    %v211 = vpop.f32.mrb[0].mxu0
    %212 = vmatprep.mubr.bf16.mxu0 0
    %213 = vmatmul.mubr.bf16.gmra.mrb[0].mxu0 %v162
    %v214 = vpop.f32.mrb[0].mxu0
    %v215 = vadd.f32 0.0, %v214
    %v216 = vpop.f32.mrb[0].mxu0
    %v217 = vpop.f32.mrb[0].mxu0
    %v218 = vpop.f32.mrb[0].mxu0
    %219 = vdwg.mxu0
    %v228 = vunpack.c.l.b16 %v106
    %v229 = vunpack.c.l.b16 %v107
    %v230 = vunpack.c.l.b16 %v108
    %v231 = vunpack.c.l.b16 %v109
    %v232 = vunpack.c.l.b16 %v110
    %v233 = vunpack.c.l.b16 %v111
    %v234 = vunpack.c.l.b16 %v112
    %v235 = vunpack.c.l.b16 %v113
    %v236 = vpack.c.b16 %v229, %v228
    %v237 = vpack.c.b16 %v231, %v230
    %v238 = vpack.c.b16 %v233, %v232
    %v239 = vpack.c.b16 %v235, %v234
    %v245 = vsel %vm87, %v103, 0
    %v248 = vsel %vm87, %v104, 0
    %v251 = vsel %vm87, %v105, 0
    %253 = vmatprep.subr.bf16.mxu0 0
    %254 = vmatpush1.bf16.msra.mxu0 %v236
    %255 = vmatprep.subr.bf16.mxu0 0
    %256 = vmatpush1.bf16.msra.mxu0 %v237
    %257 = vmatprep.subr.bf16.mxu0 0
    %258 = vmatpush1.bf16.msra.mxu0 %v238
    %259 = vmatprep.subr.bf16.mxu0 0
    %260 = vmatpush1.bf16.msra.mxu0 %v239
    %261 = vmatprep.subr.bf16.mxu0 0
    %262 = vmatpush1.bf16.msra.mxu0 0
    %263 = vmatprep.subr.bf16.mxu0 0
    %264 = vmatpush1.bf16.msra.mxu0 0
    %265 = vmatprep.subr.bf16.mxu0 0
    %266 = vmatpush1.bf16.msra.mxu0 0
    %267 = vmatprep.subr.bf16.mxu0 0
    %268 = vmatpush1.bf16.msra.mxu0 0
    %269 = vmatprep.subr.bf16.mxu0 0
    %270 = vmatpush1.bf16.msra.mxu0 0
    %271 = vmatprep.subr.bf16.mxu0 0
    %272 = vmatpush1.bf16.msra.mxu0 0
    %273 = vmatprep.subr.bf16.mxu0 0
    %274 = vmatpush1.bf16.msra.mxu0 0
    %275 = vmatprep.subr.bf16.mxu0 0
    %276 = vmatpush1.bf16.msra.mxu0 0
    %277 = vmatprep.subr.bf16.mxu0 0
    %278 = vmatpush1.bf16.msra.mxu0 0
    %279 = vmatprep.subr.bf16.mxu0 0
    %280 = vmatpush1.bf16.msra.mxu0 0
    %281 = vmatprep.subr.bf16.mxu0 0
    %282 = vmatpush1.bf16.msra.mxu0 0
    %283 = vmatprep.subr.bf16.mxu0 0
    %284 = vmatpush1.bf16.msra.mxu0 0
    %285 = vmatprep.mubr.bf16.mxu0 0
    %286 = vmatmul.mubr.bf16.gmra.mrb[0].mxu0 %v245
    %v287 = vpop.f32.mrb[0].mxu0
    %v288 = vadd.f32 %v199, %v287
    %v289 = vpop.f32.mrb[0].mxu0
    %v290 = vpop.f32.mrb[0].mxu0
    %v291 = vadd.f32 %v202, %v290
    %v292 = vpop.f32.mrb[0].mxu0
    %293 = vmatprep.mubr.bf16.mxu0 0
    %294 = vmatmul.mubr.bf16.gmra.mrb[0].mxu0 %v248
    %v295 = vpop.f32.mrb[0].mxu0
    %v296 = vadd.f32 %v207, %v295
    %v297 = vpop.f32.mrb[0].mxu0
    %v298 = vpop.f32.mrb[0].mxu0
    %v299 = vadd.f32 %v210, %v298
    %v300 = vpop.f32.mrb[0].mxu0
    %301 = vmatprep.mubr.bf16.mxu0 0
    %302 = vmatmul.mubr.bf16.gmra.mrb[0].mxu0 %v251
    %v303 = vpop.f32.mrb[0].mxu0
    %v304 = vadd.f32 %v215, %v303
    %v305 = vpop.f32.mrb[0].mxu0
    %v306 = vpop.f32.mrb[0].mxu0
    %v307 = vpop.f32.mrb[0].mxu0
    %308 = vdwg.mxu0
    %v309 = vld [vmem:[#allocation2 + $0x2] sm:$0xff]
    %v310 = vld [vmem:[#allocation2 + $0xa] sm:$0xff]
    %v311 = vld [vmem:[#allocation2 + $0x12] sm:$0xff]
    %v312 = vld [vmem:[#allocation2 + $0x1a] sm:$0xff]
    %v313 = vld [vmem:[#allocation2 + $0x22] sm:$0x3]
    %v314 = vpack.c.bf16 %v310, %v309
    %v315 = vpack.c.bf16 %v312, %v311
    %v316 = vpack.c.bf16 %v313, %v313
    %s317 = scalar_lea.vmem [#allocation6], 64
    %v318 = vld [vmem:[%s317] sm:$0xf]
    %v319 = vld [vmem:[%s317 + $0x4] sm:$0xf]
    %v320 = vld [vmem:[%s317 + $0x8] sm:$0xf]
    %v321 = vld [vmem:[%s317 + $0xc] sm:$0xf]
    %v322 = vld [vmem:[%s317 + $0x10] sm:$0xf]
    %v323 = vld [vmem:[%s317 + $0x14] sm:$0xf]
    %v324 = vld [vmem:[%s317 + $0x18] sm:$0xf]
    %v325 = vld [vmem:[%s317 + $0x1c] sm:$0xf]
    %v334 = vunpack.c.l.b16 %v318
    %v335 = vunpack.c.l.b16 %v319
    %v336 = vunpack.c.l.b16 %v320
    %v337 = vunpack.c.l.b16 %v321
    %v338 = vunpack.c.l.b16 %v322
    %v339 = vunpack.c.l.b16 %v323
    %v340 = vunpack.c.l.b16 %v324
    %v341 = vunpack.c.l.b16 %v325
    %v342 = vpack.c.b16 %v335, %v334
    %v343 = vpack.c.b16 %v337, %v336
    %v344 = vpack.c.b16 %v339, %v338
    %v345 = vpack.c.b16 %v341, %v340
    %v351 = vsel %vm87, %v314, 0
    %v354 = vsel %vm87, %v315, 0
    %v357 = vsel %vm87, %v316, 0
    %359 = vmatprep.subr.bf16.mxu0 0
    %360 = vmatpush1.bf16.msra.mxu0 %v342
    %361 = vmatprep.subr.bf16.mxu0 0
    %362 = vmatpush1.bf16.msra.mxu0 %v343
    %363 = vmatprep.subr.bf16.mxu0 0
    %364 = vmatpush1.bf16.msra.mxu0 %v344
    %365 = vmatprep.subr.bf16.mxu0 0
    %366 = vmatpush1.bf16.msra.mxu0 %v345
    %367 = vmatprep.subr.bf16.mxu0 0
    %368 = vmatpush1.bf16.msra.mxu0 0
    %369 = vmatprep.subr.bf16.mxu0 0
    %370 = vmatpush1.bf16.msra.mxu0 0
    %371 = vmatprep.subr.bf16.mxu0 0
    %372 = vmatpush1.bf16.msra.mxu0 0
    %373 = vmatprep.subr.bf16.mxu0 0
    %374 = vmatpush1.bf16.msra.mxu0 0
    %375 = vmatprep.subr.bf16.mxu0 0
    %376 = vmatpush1.bf16.msra.mxu0 0
    %377 = vmatprep.subr.bf16.mxu0 0
    %378 = vmatpush1.bf16.msra.mxu0 0
    %379 = vmatprep.subr.bf16.mxu0 0
    %380 = vmatpush1.bf16.msra.mxu0 0
    %381 = vmatprep.subr.bf16.mxu0 0
    %382 = vmatpush1.bf16.msra.mxu0 0
    %383 = vmatprep.subr.bf16.mxu0 0
    %384 = vmatpush1.bf16.msra.mxu0 0
    %385 = vmatprep.subr.bf16.mxu0 0
    %386 = vmatpush1.bf16.msra.mxu0 0
    %387 = vmatprep.subr.bf16.mxu0 0
    %388 = vmatpush1.bf16.msra.mxu0 0
    %389 = vmatprep.subr.bf16.mxu0 0
    %390 = vmatpush1.bf16.msra.mxu0 0
    %391 = vmatprep.mubr.bf16.mxu0 0
    %392 = vmatmul.mubr.bf16.gmra.mrb[0].mxu0 %v351
    %v393 = vpop.f32.mrb[0].mxu0
    %v394 = vadd.f32 0.0, %v393
    %v395 = vpop.f32.mrb[0].mxu0
    %v396 = vpop.f32.mrb[0].mxu0
    %v397 = vadd.f32 0.0, %v396
    %v398 = vpop.f32.mrb[0].mxu0
    %399 = vmatprep.mubr.bf16.mxu0 0
    %400 = vmatmul.mubr.bf16.gmra.mrb[0].mxu0 %v354
    %v401 = vpop.f32.mrb[0].mxu0
    %v402 = vadd.f32 0.0, %v401
    %v403 = vpop.f32.mrb[0].mxu0
    %v404 = vpop.f32.mrb[0].mxu0
    %v405 = vadd.f32 0.0, %v404
    %v406 = vpop.f32.mrb[0].mxu0
    %407 = vmatprep.mubr.bf16.mxu0 0
    %408 = vmatmul.mubr.bf16.gmra.mrb[0].mxu0 %v357
    %v409 = vpop.f32.mrb[0].mxu0
    %v410 = vadd.f32 0.0, %v409
    %v411 = vpop.f32.mrb[0].mxu0
    %v412 = vpop.f32.mrb[0].mxu0
    %v413 = vpop.f32.mrb[0].mxu0
    %414 = vdwg.mxu0
    %v415 = vadd.f32 %v288, %v394
    %v416 = vadd.f32 %v291, %v397
    %v417 = vadd.f32 %v296, %v402
    %v418 = vadd.f32 %v299, %v405
    %v419 = vadd.f32 %v304, %v410
    %v420 = vpack.c.bf16 %v416, %v415
    %v421 = vpack.c.bf16 %v418, %v417
    %v422 = vpack.c.bf16 %v419, %v419
    %v423 = vld [vmem:[#allocation8] sm:$0xf]
    %vm424 = vcmask 277504
    %v426 = vsel %vm424, %v423, 0
    %vm428 = vcmask 1040384
    %v430 = vsel %vm428, %v422, 0
    %432 = vmatprep.subr.bf16.mxu0 0
    %433 = vmatpush1.bf16.msra.mxu0 %v420
    %434 = vmatprep.subr.bf16.mxu0 0
    %435 = vmatpush1.bf16.msra.mxu0 %v421
    %436 = vmatprep.subr.bf16.mxu0 0
    %437 = vmatpush1.bf16.msra.mxu0 %v430
    %438 = vmatprep.subr.bf16.mxu0 0
    %439 = vmatpush1.bf16.msra.mxu0 0
    %440 = vmatprep.subr.bf16.mxu0 0
    %441 = vmatpush1.bf16.msra.mxu0 0
    %442 = vmatprep.subr.bf16.mxu0 0
    %443 = vmatpush1.bf16.msra.mxu0 0
    %444 = vmatprep.subr.bf16.mxu0 0
    %445 = vmatpush1.bf16.msra.mxu0 0
    %446 = vmatprep.subr.bf16.mxu0 0
    %447 = vmatpush1.bf16.msra.mxu0 0
    %448 = vmatprep.subr.bf16.mxu0 0
    %449 = vmatpush1.bf16.msra.mxu0 0
    %450 = vmatprep.subr.bf16.mxu0 0
    %451 = vmatpush1.bf16.msra.mxu0 0
    %452 = vmatprep.subr.bf16.mxu0 0
    %453 = vmatpush1.bf16.msra.mxu0 0
    %454 = vmatprep.subr.bf16.mxu0 0
    %455 = vmatpush1.bf16.msra.mxu0 0
    %456 = vmatprep.subr.bf16.mxu0 0
    %457 = vmatpush1.bf16.msra.mxu0 0
    %458 = vmatprep.subr.bf16.mxu0 0
    %459 = vmatpush1.bf16.msra.mxu0 0
    %460 = vmatprep.subr.bf16.mxu0 0
    %461 = vmatpush1.bf16.msra.mxu0 0
    %462 = vmatprep.subr.bf16.mxu0 0
    %463 = vmatpush1.bf16.msra.mxu0 0
    %464 = vmatprep.mubr.bf16.mxu0 0
    %465 = vmatmul.mubr.bf16.gmra.mrb[0].mxu0 %v426
    %v466 = vpop.f32.mrb[0].mxu0
    %v467 = vadd.f32 0.0, %v466
    %v468 = vpop.f32.mrb[0].mxu0
    %v469 = vpop.f32.mrb[0].mxu0
    %v470 = vpop.f32.mrb[0].mxu0
    %471 = vdwg.mxu0
    %s472 = scalar_lea.vmem [#allocation8], 4
    %v473 = vld [vmem:[%s472] sm:$0xf]
    %v475 = vsel %vm424, %v473, 0
    %477 = vmatprep.subr.bf16.mxu0 0
    %478 = vmatpush1.bf16.msra.mxu0 %v420
    %479 = vmatprep.subr.bf16.mxu0 0
    %480 = vmatpush1.bf16.msra.mxu0 %v421
    %481 = vmatprep.subr.bf16.mxu0 0
    %482 = vmatpush1.bf16.msra.mxu0 %v430
    %483 = vmatprep.subr.bf16.mxu0 0
    %484 = vmatpush1.bf16.msra.mxu0 0
    %485 = vmatprep.subr.bf16.mxu0 0
    %486 = vmatpush1.bf16.msra.mxu0 0
    %487 = vmatprep.subr.bf16.mxu0 0
    %488 = vmatpush1.bf16.msra.mxu0 0
    %489 = vmatprep.subr.bf16.mxu0 0
    %490 = vmatpush1.bf16.msra.mxu0 0
    %491 = vmatprep.subr.bf16.mxu0 0
    %492 = vmatpush1.bf16.msra.mxu0 0
    %493 = vmatprep.subr.bf16.mxu0 0
    %494 = vmatpush1.bf16.msra.mxu0 0
    %495 = vmatprep.subr.bf16.mxu0 0
    %496 = vmatpush1.bf16.msra.mxu0 0
    %497 = vmatprep.subr.bf16.mxu0 0
    %498 = vmatpush1.bf16.msra.mxu0 0
    %499 = vmatprep.subr.bf16.mxu0 0
    %500 = vmatpush1.bf16.msra.mxu0 0
    %501 = vmatprep.subr.bf16.mxu0 0
    %502 = vmatpush1.bf16.msra.mxu0 0
    %503 = vmatprep.subr.bf16.mxu0 0
    %504 = vmatpush1.bf16.msra.mxu0 0
    %505 = vmatprep.subr.bf16.mxu0 0
    %506 = vmatpush1.bf16.msra.mxu0 0
    %507 = vmatprep.subr.bf16.mxu0 0
    %508 = vmatpush1.bf16.msra.mxu0 0
    %509 = vmatprep.mubr.bf16.mxu0 0
    %510 = vmatmul.mubr.bf16.gmra.mrb[0].mxu0 %v475
    %v511 = vpop.f32.mrb[0].mxu0
    %v512 = vadd.f32 0.0, %v511
    %v513 = vpop.f32.mrb[0].mxu0
    %v514 = vpop.f32.mrb[0].mxu0
    %v515 = vpop.f32.mrb[0].mxu0
    %516 = vdwg.mxu0
    %v517 = vmax.f32 %v467, %v512
    %v518 = vpack.c.bf16 %v517, %v517
    %s519 = scalar_lea.vmem [#allocation8], 8
    %v520 = vld [vmem:[%s519] sm:$0xf]
    %v522 = vsel %vm424, %v520, 0
    %524 = vmatprep.subr.bf16.mxu0 0
    %525 = vmatpush1.bf16.msra.mxu0 %v420
    %526 = vmatprep.subr.bf16.mxu0 0
    %527 = vmatpush1.bf16.msra.mxu0 %v421
    %528 = vmatprep.subr.bf16.mxu0 0
    %529 = vmatpush1.bf16.msra.mxu0 %v430
    %530 = vmatprep.subr.bf16.mxu0 0
    %531 = vmatpush1.bf16.msra.mxu0 0
    %532 = vmatprep.subr.bf16.mxu0 0
    %533 = vmatpush1.bf16.msra.mxu0 0
    %534 = vmatprep.subr.bf16.mxu0 0
    %535 = vmatpush1.bf16.msra.mxu0 0
    %536 = vmatprep.subr.bf16.mxu0 0
    %537 = vmatpush1.bf16.msra.mxu0 0
    %538 = vmatprep.subr.bf16.mxu0 0
    %539 = vmatpush1.bf16.msra.mxu0 0
    %540 = vmatprep.subr.bf16.mxu0 0
    %541 = vmatpush1.bf16.msra.mxu0 0
    %542 = vmatprep.subr.bf16.mxu0 0
    %543 = vmatpush1.bf16.msra.mxu0 0
    %544 = vmatprep.subr.bf16.mxu0 0
    %545 = vmatpush1.bf16.msra.mxu0 0
    %546 = vmatprep.subr.bf16.mxu0 0
    %547 = vmatpush1.bf16.msra.mxu0 0
    %548 = vmatprep.subr.bf16.mxu0 0
    %549 = vmatpush1.bf16.msra.mxu0 0
    %550 = vmatprep.subr.bf16.mxu0 0
    %551 = vmatpush1.bf16.msra.mxu0 0
    %552 = vmatprep.subr.bf16.mxu0 0
    %553 = vmatpush1.bf16.msra.mxu0 0
    %554 = vmatprep.subr.bf16.mxu0 0
    %555 = vmatpush1.bf16.msra.mxu0 0
    %556 = vmatprep.mubr.bf16.mxu0 0
    %557 = vmatmul.mubr.bf16.gmra.mrb[0].mxu0 %v522
    %v558 = vpop.f32.mrb[0].mxu0
    %v559 = vadd.f32 0.0, %v558
    %v560 = vpop.f32.mrb[0].mxu0
    %v561 = vpop.f32.mrb[0].mxu0
    %v562 = vpop.f32.mrb[0].mxu0
    %563 = vdwg.mxu0
    %s564 = scalar_lea.vmem [#allocation8], 12
    %v565 = vld [vmem:[%s564] sm:$0xf]
    %v567 = vsel %vm424, %v565, 0
    %569 = vmatprep.subr.bf16.mxu0 0
    %570 = vmatpush1.bf16.msra.mxu0 %v420
    %571 = vmatprep.subr.bf16.mxu0 0
    %572 = vmatpush1.bf16.msra.mxu0 %v421
    %573 = vmatprep.subr.bf16.mxu0 0
    %574 = vmatpush1.bf16.msra.mxu0 %v430
    %575 = vmatprep.subr.bf16.mxu0 0
    %576 = vmatpush1.bf16.msra.mxu0 0
    %577 = vmatprep.subr.bf16.mxu0 0
    %578 = vmatpush1.bf16.msra.mxu0 0
    %579 = vmatprep.subr.bf16.mxu0 0
    %580 = vmatpush1.bf16.msra.mxu0 0
    %581 = vmatprep.subr.bf16.mxu0 0
    %582 = vmatpush1.bf16.msra.mxu0 0
    %583 = vmatprep.subr.bf16.mxu0 0
    %584 = vmatpush1.bf16.msra.mxu0 0
    %585 = vmatprep.subr.bf16.mxu0 0
    %586 = vmatpush1.bf16.msra.mxu0 0
    %587 = vmatprep.subr.bf16.mxu0 0
    %588 = vmatpush1.bf16.msra.mxu0 0
    %589 = vmatprep.subr.bf16.mxu0 0
    %590 = vmatpush1.bf16.msra.mxu0 0
    %591 = vmatprep.subr.bf16.mxu0 0
    %592 = vmatpush1.bf16.msra.mxu0 0
    %593 = vmatprep.subr.bf16.mxu0 0
    %594 = vmatpush1.bf16.msra.mxu0 0
    %595 = vmatprep.subr.bf16.mxu0 0
    %596 = vmatpush1.bf16.msra.mxu0 0
    %597 = vmatprep.subr.bf16.mxu0 0
    %598 = vmatpush1.bf16.msra.mxu0 0
    %599 = vmatprep.subr.bf16.mxu0 0
    %600 = vmatpush1.bf16.msra.mxu0 0
    %601 = vmatprep.mubr.bf16.mxu0 0
    %602 = vmatmul.mubr.bf16.gmra.mrb[0].mxu0 %v567
    %v603 = vpop.f32.mrb[0].mxu0
    %v604 = vadd.f32 0.0, %v603
    %v605 = vpop.f32.mrb[0].mxu0
    %v606 = vpop.f32.mrb[0].mxu0
    %v607 = vpop.f32.mrb[0].mxu0
    %608 = vdwg.mxu0
    %v609 = vmax.f32 %v559, %v604
    %v610 = vpack.c.bf16 %v609, %v609
    %v611 = vld [vmem:[#allocation9] sm:$0xf]
    %v612 = vld [vmem:[#allocation9 + $0x4] sm:$0xf]
    %v613 = vld [vmem:[#allocation9 + $0x8] sm:$0xf]
    %v614 = vld [vmem:[#allocation9 + $0xc] sm:$0xf]
    %v615 = vld [vmem:[#allocation9 + $0x10] sm:$0xf]
    %v616 = vld [vmem:[#allocation9 + $0x14] sm:$0xf]
    %v617 = vld [vmem:[#allocation9 + $0x18] sm:$0xf]
    %v618 = vld [vmem:[#allocation9 + $0x1c] sm:$0xf]
    %v619 = vld [vmem:[#allocation9 + $0x20] sm:$0xf]
    %v620 = vld [vmem:[#allocation9 + $0x24] sm:$0xf]
    %v621 = vld [vmem:[#allocation9 + $0x28] sm:$0xf]
    %v622 = vld [vmem:[#allocation9 + $0x2c] sm:$0xf]
    %v623 = vld [vmem:[#allocation9 + $0x30] sm:$0xf]
    %v624 = vld [vmem:[#allocation9 + $0x34] sm:$0xf]
    %v625 = vld [vmem:[#allocation9 + $0x38] sm:$0xf]
    %v626 = vld [vmem:[#allocation9 + $0x3c] sm:$0xf]
    %v643 = vunpack.c.l.b16 %v611
    %v644 = vunpack.c.l.b16 %v612
    %v645 = vunpack.c.l.b16 %v613
    %v646 = vunpack.c.l.b16 %v614
    %v647 = vunpack.c.l.b16 %v615
    %v648 = vunpack.c.l.b16 %v616
    %v649 = vunpack.c.l.b16 %v617
    %v650 = vunpack.c.l.b16 %v618
    %v651 = vunpack.c.l.b16 %v619
    %v652 = vunpack.c.l.b16 %v620
    %v653 = vunpack.c.l.b16 %v621
    %v654 = vunpack.c.l.b16 %v622
    %v655 = vunpack.c.l.b16 %v623
    %v656 = vunpack.c.l.b16 %v624
    %v657 = vunpack.c.l.b16 %v625
    %v658 = vunpack.c.l.b16 %v626
    %v659 = vpack.c.b16 %v644, %v643
    %v660 = vpack.c.b16 %v646, %v645
    %v661 = vpack.c.b16 %v648, %v647
    %v662 = vpack.c.b16 %v650, %v649
    %v663 = vpack.c.b16 %v652, %v651
    %v664 = vpack.c.b16 %v654, %v653
    %v665 = vpack.c.b16 %v656, %v655
    %v666 = vpack.c.b16 %v658, %v657
    %675 = vmatprep.subr.bf16.mxu0 0
    %676 = vmatpush1.bf16.msra.mxu0 %v659
    %677 = vmatprep.subr.bf16.mxu0 0
    %678 = vmatpush1.bf16.msra.mxu0 %v660
    %679 = vmatprep.subr.bf16.mxu0 0
    %680 = vmatpush1.bf16.msra.mxu0 %v661
    %681 = vmatprep.subr.bf16.mxu0 0
    %682 = vmatpush1.bf16.msra.mxu0 %v662
    %683 = vmatprep.subr.bf16.mxu0 0
    %684 = vmatpush1.bf16.msra.mxu0 %v663
    %685 = vmatprep.subr.bf16.mxu0 0
    %686 = vmatpush1.bf16.msra.mxu0 %v664
    %687 = vmatprep.subr.bf16.mxu0 0
    %688 = vmatpush1.bf16.msra.mxu0 %v665
    %689 = vmatprep.subr.bf16.mxu0 0
    %690 = vmatpush1.bf16.msra.mxu0 %v666
    %691 = vmatprep.subr.bf16.mxu0 0
    %692 = vmatpush1.bf16.msra.mxu0 0
    %693 = vmatprep.subr.bf16.mxu0 0
    %694 = vmatpush1.bf16.msra.mxu0 0
    %695 = vmatprep.subr.bf16.mxu0 0
    %696 = vmatpush1.bf16.msra.mxu0 0
    %697 = vmatprep.subr.bf16.mxu0 0
    %698 = vmatpush1.bf16.msra.mxu0 0
    %699 = vmatprep.subr.bf16.mxu0 0
    %700 = vmatpush1.bf16.msra.mxu0 0
    %701 = vmatprep.subr.bf16.mxu0 0
    %702 = vmatpush1.bf16.msra.mxu0 0
    %703 = vmatprep.subr.bf16.mxu0 0
    %704 = vmatpush1.bf16.msra.mxu0 0
    %705 = vmatprep.subr.bf16.mxu0 0
    %706 = vmatpush1.bf16.msra.mxu0 0
    %707 = vmatprep.mubr.bf16.mxu0 0
    %708 = vmatmul.mubr.bf16.gmra.mrb[0].mxu0 %v518
    %v709 = vpop.f32.mrb[0].mxu0
    %v710 = vadd.f32 0.0, %v709
    %v711 = vpop.f32.mrb[0].mxu0
    %v712 = vpop.f32.mrb[0].mxu0
    %v713 = vpop.f32.mrb[0].mxu0
    %714 = vdwg.mxu0
    %s715 = scalar_lea.vmem [#allocation9], 64
    %v716 = vld [vmem:[%s715] sm:$0xf]
    %v717 = vld [vmem:[%s715 + $0x4] sm:$0xf]
    %v718 = vld [vmem:[%s715 + $0x8] sm:$0xf]
    %v719 = vld [vmem:[%s715 + $0xc] sm:$0xf]
    %v720 = vld [vmem:[%s715 + $0x10] sm:$0xf]
    %v721 = vld [vmem:[%s715 + $0x14] sm:$0xf]
    %v722 = vld [vmem:[%s715 + $0x18] sm:$0xf]
    %v723 = vld [vmem:[%s715 + $0x1c] sm:$0xf]
    %v724 = vld [vmem:[%s715 + $0x20] sm:$0xf]
    %v725 = vld [vmem:[%s715 + $0x24] sm:$0xf]
    %v726 = vld [vmem:[%s715 + $0x28] sm:$0xf]
    %v727 = vld [vmem:[%s715 + $0x2c] sm:$0xf]
    %v728 = vld [vmem:[%s715 + $0x30] sm:$0xf]
    %v729 = vld [vmem:[%s715 + $0x34] sm:$0xf]
    %v730 = vld [vmem:[%s715 + $0x38] sm:$0xf]
    %v731 = vld [vmem:[%s715 + $0x3c] sm:$0xf]
    %v748 = vunpack.c.l.b16 %v716
    %v749 = vunpack.c.l.b16 %v717
    %v750 = vunpack.c.l.b16 %v718
    %v751 = vunpack.c.l.b16 %v719
    %v752 = vunpack.c.l.b16 %v720
    %v753 = vunpack.c.l.b16 %v721
    %v754 = vunpack.c.l.b16 %v722
    %v755 = vunpack.c.l.b16 %v723
    %v756 = vunpack.c.l.b16 %v724
    %v757 = vunpack.c.l.b16 %v725
    %v758 = vunpack.c.l.b16 %v726
    %v759 = vunpack.c.l.b16 %v727
    %v760 = vunpack.c.l.b16 %v728
    %v761 = vunpack.c.l.b16 %v729
    %v762 = vunpack.c.l.b16 %v730
    %v763 = vunpack.c.l.b16 %v731
    %v764 = vpack.c.b16 %v749, %v748
    %v765 = vpack.c.b16 %v751, %v750
    %v766 = vpack.c.b16 %v753, %v752
    %v767 = vpack.c.b16 %v755, %v754
    %v768 = vpack.c.b16 %v757, %v756
    %v769 = vpack.c.b16 %v759, %v758
    %v770 = vpack.c.b16 %v761, %v760
    %v771 = vpack.c.b16 %v763, %v762
    %780 = vmatprep.subr.bf16.mxu0 0
    %781 = vmatpush1.bf16.msra.mxu0 %v764
    %782 = vmatprep.subr.bf16.mxu0 0
    %783 = vmatpush1.bf16.msra.mxu0 %v765
    %784 = vmatprep.subr.bf16.mxu0 0
    %785 = vmatpush1.bf16.msra.mxu0 %v766
    %786 = vmatprep.subr.bf16.mxu0 0
    %787 = vmatpush1.bf16.msra.mxu0 %v767
    %788 = vmatprep.subr.bf16.mxu0 0
    %789 = vmatpush1.bf16.msra.mxu0 %v768
    %790 = vmatprep.subr.bf16.mxu0 0
    %791 = vmatpush1.bf16.msra.mxu0 %v769
    %792 = vmatprep.subr.bf16.mxu0 0
    %793 = vmatpush1.bf16.msra.mxu0 %v770
    %794 = vmatprep.subr.bf16.mxu0 0
    %795 = vmatpush1.bf16.msra.mxu0 %v771
    %796 = vmatprep.subr.bf16.mxu0 0
    %797 = vmatpush1.bf16.msra.mxu0 0
    %798 = vmatprep.subr.bf16.mxu0 0
    %799 = vmatpush1.bf16.msra.mxu0 0
    %800 = vmatprep.subr.bf16.mxu0 0
    %801 = vmatpush1.bf16.msra.mxu0 0
    %802 = vmatprep.subr.bf16.mxu0 0
    %803 = vmatpush1.bf16.msra.mxu0 0
    %804 = vmatprep.subr.bf16.mxu0 0
    %805 = vmatpush1.bf16.msra.mxu0 0
    %806 = vmatprep.subr.bf16.mxu0 0
    %807 = vmatpush1.bf16.msra.mxu0 0
    %808 = vmatprep.subr.bf16.mxu0 0
    %809 = vmatpush1.bf16.msra.mxu0 0
    %810 = vmatprep.subr.bf16.mxu0 0
    %811 = vmatpush1.bf16.msra.mxu0 0
    %812 = vmatprep.mubr.bf16.mxu0 0
    %813 = vmatmul.mubr.bf16.gmra.mrb[0].mxu0 %v518
    %v814 = vpop.f32.mrb[0].mxu0
    %v815 = vadd.f32 0.0, %v814
    %v816 = vpop.f32.mrb[0].mxu0
    %v817 = vpop.f32.mrb[0].mxu0
    %v818 = vpop.f32.mrb[0].mxu0
    %819 = vdwg.mxu0
    %v820 = vmax.f32 %v710, %v815
    %s821 = scalar_lea.vmem [#allocation9], 128
    %v822 = vld [vmem:[%s821] sm:$0xf]
    %v823 = vld [vmem:[%s821 + $0x4] sm:$0xf]
    %v824 = vld [vmem:[%s821 + $0x8] sm:$0xf]
    %v825 = vld [vmem:[%s821 + $0xc] sm:$0xf]
    %v826 = vld [vmem:[%s821 + $0x10] sm:$0xf]
    %v827 = vld [vmem:[%s821 + $0x14] sm:$0xf]
    %v828 = vld [vmem:[%s821 + $0x18] sm:$0xf]
    %v829 = vld [vmem:[%s821 + $0x1c] sm:$0xf]
    %v830 = vld [vmem:[%s821 + $0x20] sm:$0xf]
    %v831 = vld [vmem:[%s821 + $0x24] sm:$0xf]
    %v832 = vld [vmem:[%s821 + $0x28] sm:$0xf]
    %v833 = vld [vmem:[%s821 + $0x2c] sm:$0xf]
    %v834 = vld [vmem:[%s821 + $0x30] sm:$0xf]
    %v835 = vld [vmem:[%s821 + $0x34] sm:$0xf]
    %v836 = vld [vmem:[%s821 + $0x38] sm:$0xf]
    %v837 = vld [vmem:[%s821 + $0x3c] sm:$0xf]
    %v854 = vunpack.c.l.b16 %v822
    %v855 = vunpack.c.l.b16 %v823
    %v856 = vunpack.c.l.b16 %v824
    %v857 = vunpack.c.l.b16 %v825
    %v858 = vunpack.c.l.b16 %v826
    %v859 = vunpack.c.l.b16 %v827
    %v860 = vunpack.c.l.b16 %v828
    %v861 = vunpack.c.l.b16 %v829
    %v862 = vunpack.c.l.b16 %v830
    %v863 = vunpack.c.l.b16 %v831
    %v864 = vunpack.c.l.b16 %v832
    %v865 = vunpack.c.l.b16 %v833
    %v866 = vunpack.c.l.b16 %v834
    %v867 = vunpack.c.l.b16 %v835
    %v868 = vunpack.c.l.b16 %v836
    %v869 = vunpack.c.l.b16 %v837
    %v870 = vpack.c.b16 %v855, %v854
    %v871 = vpack.c.b16 %v857, %v856
    %v872 = vpack.c.b16 %v859, %v858
    %v873 = vpack.c.b16 %v861, %v860
    %v874 = vpack.c.b16 %v863, %v862
    %v875 = vpack.c.b16 %v865, %v864
    %v876 = vpack.c.b16 %v867, %v866
    %v877 = vpack.c.b16 %v869, %v868
    %886 = vmatprep.subr.bf16.mxu0 0
    %887 = vmatpush1.bf16.msra.mxu0 %v870
    %888 = vmatprep.subr.bf16.mxu0 0
    %889 = vmatpush1.bf16.msra.mxu0 %v871
    %890 = vmatprep.subr.bf16.mxu0 0
    %891 = vmatpush1.bf16.msra.mxu0 %v872
    %892 = vmatprep.subr.bf16.mxu0 0
    %893 = vmatpush1.bf16.msra.mxu0 %v873
    %894 = vmatprep.subr.bf16.mxu0 0
    %895 = vmatpush1.bf16.msra.mxu0 %v874
    %896 = vmatprep.subr.bf16.mxu0 0
    %897 = vmatpush1.bf16.msra.mxu0 %v875
    %898 = vmatprep.subr.bf16.mxu0 0
    %899 = vmatpush1.bf16.msra.mxu0 %v876
    %900 = vmatprep.subr.bf16.mxu0 0
    %901 = vmatpush1.bf16.msra.mxu0 %v877
    %902 = vmatprep.subr.bf16.mxu0 0
    %903 = vmatpush1.bf16.msra.mxu0 0
    %904 = vmatprep.subr.bf16.mxu0 0
    %905 = vmatpush1.bf16.msra.mxu0 0
    %906 = vmatprep.subr.bf16.mxu0 0
    %907 = vmatpush1.bf16.msra.mxu0 0
    %908 = vmatprep.subr.bf16.mxu0 0
    %909 = vmatpush1.bf16.msra.mxu0 0
    %910 = vmatprep.subr.bf16.mxu0 0
    %911 = vmatpush1.bf16.msra.mxu0 0
    %912 = vmatprep.subr.bf16.mxu0 0
    %913 = vmatpush1.bf16.msra.mxu0 0
    %914 = vmatprep.subr.bf16.mxu0 0
    %915 = vmatpush1.bf16.msra.mxu0 0
    %916 = vmatprep.subr.bf16.mxu0 0
    %917 = vmatpush1.bf16.msra.mxu0 0
    %918 = vmatprep.mubr.bf16.mxu0 0
    %919 = vmatmul.mubr.bf16.gmra.mrb[0].mxu0 %v610
    %v920 = vpop.f32.mrb[0].mxu0
    %v921 = vadd.f32 0.0, %v920
    %v922 = vpop.f32.mrb[0].mxu0
    %v923 = vpop.f32.mrb[0].mxu0
    %v924 = vpop.f32.mrb[0].mxu0
    %925 = vdwg.mxu0
    %s926 = scalar_lea.vmem [#allocation9], 192
    %v927 = vld [vmem:[%s926] sm:$0xf]
    %v928 = vld [vmem:[%s926 + $0x4] sm:$0xf]
    %v929 = vld [vmem:[%s926 + $0x8] sm:$0xf]
    %v930 = vld [vmem:[%s926 + $0xc] sm:$0xf]
    %v931 = vld [vmem:[%s926 + $0x10] sm:$0xf]
    %v932 = vld [vmem:[%s926 + $0x14] sm:$0xf]
    %v933 = vld [vmem:[%s926 + $0x18] sm:$0xf]
    %v934 = vld [vmem:[%s926 + $0x1c] sm:$0xf]
    %v935 = vld [vmem:[%s926 + $0x20] sm:$0xf]
    %v936 = vld [vmem:[%s926 + $0x24] sm:$0xf]
    %v937 = vld [vmem:[%s926 + $0x28] sm:$0xf]
    %v938 = vld [vmem:[%s926 + $0x2c] sm:$0xf]
    %v939 = vld [vmem:[%s926 + $0x30] sm:$0xf]
    %v940 = vld [vmem:[%s926 + $0x34] sm:$0xf]
    %v941 = vld [vmem:[%s926 + $0x38] sm:$0xf]
    %v942 = vld [vmem:[%s926 + $0x3c] sm:$0xf]
    %v959 = vunpack.c.l.b16 %v927
    %v960 = vunpack.c.l.b16 %v928
    %v961 = vunpack.c.l.b16 %v929
    %v962 = vunpack.c.l.b16 %v930
    %v963 = vunpack.c.l.b16 %v931
    %v964 = vunpack.c.l.b16 %v932
    %v965 = vunpack.c.l.b16 %v933
    %v966 = vunpack.c.l.b16 %v934
    %v967 = vunpack.c.l.b16 %v935
    %v968 = vunpack.c.l.b16 %v936
    %v969 = vunpack.c.l.b16 %v937
    %v970 = vunpack.c.l.b16 %v938
    %v971 = vunpack.c.l.b16 %v939
    %v972 = vunpack.c.l.b16 %v940
    %v973 = vunpack.c.l.b16 %v941
    %v974 = vunpack.c.l.b16 %v942
    %v975 = vpack.c.b16 %v960, %v959
    %v976 = vpack.c.b16 %v962, %v961
    %v977 = vpack.c.b16 %v964, %v963
    %v978 = vpack.c.b16 %v966, %v965
    %v979 = vpack.c.b16 %v968, %v967
    %v980 = vpack.c.b16 %v970, %v969
    %v981 = vpack.c.b16 %v972, %v971
    %v982 = vpack.c.b16 %v974, %v973
    %991 = vmatprep.subr.bf16.mxu0 0
    %992 = vmatpush1.bf16.msra.mxu0 %v975
    %993 = vmatprep.subr.bf16.mxu0 0
    %994 = vmatpush1.bf16.msra.mxu0 %v976
    %995 = vmatprep.subr.bf16.mxu0 0
    %996 = vmatpush1.bf16.msra.mxu0 %v977
    %997 = vmatprep.subr.bf16.mxu0 0
    %998 = vmatpush1.bf16.msra.mxu0 %v978
    %999 = vmatprep.subr.bf16.mxu0 0
    %1000 = vmatpush1.bf16.msra.mxu0 %v979
    %1001 = vmatprep.subr.bf16.mxu0 0
    %1002 = vmatpush1.bf16.msra.mxu0 %v980
    %1003 = vmatprep.subr.bf16.mxu0 0
    %1004 = vmatpush1.bf16.msra.mxu0 %v981
    %1005 = vmatprep.subr.bf16.mxu0 0
    %1006 = vmatpush1.bf16.msra.mxu0 %v982
    %1007 = vmatprep.subr.bf16.mxu0 0
    %1008 = vmatpush1.bf16.msra.mxu0 0
    %1009 = vmatprep.subr.bf16.mxu0 0
    %1010 = vmatpush1.bf16.msra.mxu0 0
    %1011 = vmatprep.subr.bf16.mxu0 0
    %1012 = vmatpush1.bf16.msra.mxu0 0
    %1013 = vmatprep.subr.bf16.mxu0 0
    %1014 = vmatpush1.bf16.msra.mxu0 0
    %1015 = vmatprep.subr.bf16.mxu0 0
    %1016 = vmatpush1.bf16.msra.mxu0 0
    %1017 = vmatprep.subr.bf16.mxu0 0
    %1018 = vmatpush1.bf16.msra.mxu0 0
    %1019 = vmatprep.subr.bf16.mxu0 0
    %1020 = vmatpush1.bf16.msra.mxu0 0
    %1021 = vmatprep.subr.bf16.mxu0 0
    %1022 = vmatpush1.bf16.msra.mxu0 0
    %1023 = vmatprep.mubr.bf16.mxu0 0
    %1024 = vmatmul.mubr.bf16.gmra.mrb[0].mxu0 %v610
    %v1025 = vpop.f32.mrb[0].mxu0
    %v1026 = vadd.f32 0.0, %v1025
    %v1027 = vpop.f32.mrb[0].mxu0
    %v1028 = vpop.f32.mrb[0].mxu0
    %v1029 = vpop.f32.mrb[0].mxu0
    %1030 = vdwg.mxu0
    %v1031 = vmax.f32 %v921, %v1026
    %v1032 = vadd.f32 %v820, %v1031
    %v1033 = vld [vmem:[%s4] sm:$0x1]
    %v1035 = vlaneseq
    %v1036 = vshrl.u32 %v1035, 7
    %v1037 = vsub.s32 0, %v1036
    %v1038 = vrot.slane %v1033, %v1037
    %v1040 = vmul.f32 %v1032, %v1038
    %v1041 = vld [vmem:[%s5] sm:$0x1]
    %v1043 = vlaneseq
    %v1044 = vshrl.u32 %v1043, 7
    %v1045 = vsub.s32 0, %v1044
    %v1046 = vrot.slane %v1041, %v1045
    %v1048 = vadd.f32 %v1040, %v1046
    %vm1049 = vcmp.ge.f32.partialorder %v1048, 0.0
    %v1050 = vmul.f32 %v1048, 0.01
    %v1051 = vsel %vm1049, %v1048, %v1050
    %1052 = vst [vmem:[#allocation11] sm:$0xff] %v1051
    // Predicated region
    $region42: #{tpu_custom_call.1} parent=1 // pred_check
      _
    $region43: #{tpu_custom_call.1} parent=1 // pred_check_branch
      %1054 = sbr.rel (0) target = $region45
    $region44: #{tpu_custom_call.1} parent=1 // pred_region
      %s1056 = ssub.s32 128, 128
      %1057 = vsyncadd [#allocation5], %s1056
      %s1059 = sshll.u32 [#allocation11], 4
      %s1060 = int_to_ptr.vmem [resolvable:$true] %s1059
      %1062 = dma.vmem_to_hbm [thread:$0]  %s1060, 128, %s6, [#allocation5]
    $region45: #{tpu_custom_call.1} parent=1 // pred_fallthru
      _
    // Predicated region
    $region46: #{tpu_custom_call.1} parent=1 // pred_check
      _
    $region47: #{tpu_custom_call.1} parent=1 // pred_check_branch
      %1064 = sbr.rel (0) target = $region49
    $region48: #{tpu_custom_call.1} parent=1 // pred_region
      %1065 = dma.done [#allocation5], 128
    $region49: #{tpu_custom_call.1} parent=1 // pred_fallthru
      _
    %1066 = vsyncpa [#allocation4], 1
    %1067 = vsyncpa [#allocation7], 1
    %1068 = vsyncpa [#allocation10], 1
    %1069 = vsyncpa [#allocation5], 1

</llo_original>
